<compile_context>
chip_gen: v7x
topology: tpu7x:2x2x1
jax: 0.10.0
libtpu: 0.0.40
codegen_flags: <defaults>
</compile_context>

<pallas_src>
import functools

import jax
import jax.numpy as jnp
from jax import lax
from jax.experimental import pallas as pl
from jax.experimental.pallas import tpu as pltpu

LN_EPS = 1e-5      # PyTorch nn.LayerNorm default
_LANE = 128
_SUBLANE = 8


def _round_up(x, m):
    return ((x + m - 1) // m) * m


# ---------------------------------------------------------------------------
# Kernel
# ---------------------------------------------------------------------------
def residual_block_kernel(x_ref, w1_ref, w2_ref, p_ref, o_ref, *, d_out):
    """One batch tile of the ResidualBlock forward.

    p_ref rows: 0=b1, 1=b2, 2=gamma1, 3=beta1, 4=gamma2, 5=beta2 (rows 6-7 unused).
    Feature axes are zero-padded to a multiple of 128 lanes; padded weight
    rows/columns, biases and LN params are zero, so padded lanes of every
    intermediate are exactly zero — no masking needed.
    """
    inv_d = jnp.float32(1.0 / d_out)

    p = p_ref[...]
    b1, b2 = p[0:1, :], p[1:2, :]
    g1, be1 = p[2:3, :], p[3:4, :]
    g2, be2 = p[4:5, :], p[5:6, :]

    def layernorm(v, gamma, beta):
        # Pad lanes of v are exactly zero -> both lane reductions are the true
        # sums over the real d_out features.  The two reductions are independent
        # (E[v^2] - mean^2 form), so the XLU passes can overlap.
        mean = jnp.sum(v, axis=-1, keepdims=True) * inv_d
        mean_sq = jnp.sum(v * v, axis=-1, keepdims=True) * inv_d
        var = jnp.maximum(mean_sq - mean * mean, 0.0)     # guard tiny cancellation
        return (v - mean) * lax.rsqrt(var + LN_EPS) * gamma + beta

    x = x_ref[...]                       # bf16 (or f32) straight from DMA, no cast

    # linear1: MXU matmul, f32 accumulation.
    z = jnp.dot(x, w1_ref[...], preferred_element_type=jnp.float32) + b1

    # norm1 + ReLU (dropout == 0.0 -> identity).
    h = jnp.maximum(layernorm(z, g1, be1), 0.0)

    # linear2
    out = jnp.dot(h.astype(w2_ref.dtype), w2_ref[...],
                  preferred_element_type=jnp.float32) + b2

    # norm2 + residual (adds z = linear1 output) + final ReLU
    out = layernorm(out, g2, be2) + z
    o_ref[...] = jnp.maximum(out, 0.0).astype(o_ref.dtype)


# ---------------------------------------------------------------------------
# Wrapper
# ---------------------------------------------------------------------------
def _tpu_info():
    vmem_cap = 64 << 20        # conservative fallback (v7x per-TensorCore VMEM)
    try:
        vmem_cap = int(pltpu.get_tpu_info().vmem_capacity_bytes)
    except Exception:
        pass
    kind = ""
    try:
        kind = jax.devices()[0].device_kind.lower()
    except Exception:
        pass
    return vmem_cap, kind


def _choose_tb(B, d_in_p, d_out_p, in_itemsize, out_itemsize, vmem_cap, multi_tc):
    budget = int(vmem_cap * 0.75)
    resident = (d_in_p + d_out_p) * d_out_p * in_itemsize + _SUBLANE * d_out_p * 4
    per_row = (2 * d_in_p * in_itemsize           # double-buffered x tile
               + 2 * d_out_p * out_itemsize       # double-buffered out tile
               + 6 * d_out_p * 4)                 # f32 intermediates (z/h/out/...)
    avail = budget - resident
    tb_fit = (avail // per_row) if avail > per_row else _SUBLANE
    tb_cap = 512 if vmem_cap >= (100 << 20) else 256   # 128 MiB chips get bigger tiles
    tb = min(tb_cap, max(_SUBLANE, int(tb_fit)), _round_up(B, _SUBLANE))
    if multi_tc and B > _SUBLANE:
        # >= 2 grid steps so dimension_semantics=("parallel",) can use both TCs.
        tb = min(tb, _round_up(pl.cdiv(B, 2), _SUBLANE))
    return max(_SUBLANE, (tb // _SUBLANE) * _SUBLANE)


def prepare_residual_block_params(w1, b1, w2, b2, g1, be1, g2, be2,
                                  *, weight_dtype=jnp.bfloat16):
    """One-time parameter prep: pad feature axes to 128-lane multiples, cast weights
    to the MXU operand dtype, and pack the six (D_out,) vectors into one (8, D_out_p)
    tile (one buffer, one DMA).  w1: (D_in, D_out), w2: (D_out, D_out), pre-transposed."""
    D_in, D_out = w1.shape
    d_in_p = _round_up(D_in, _LANE)
    d_out_p = _round_up(D_out, _LANE)

    w1p = jnp.zeros((d_in_p, d_out_p), weight_dtype).at[:D_in, :D_out].set(
        w1.astype(weight_dtype))
    w2p = jnp.zeros((d_out_p, d_out_p), weight_dtype).at[:D_out, :D_out].set(
        w2.astype(weight_dtype))

    params = jnp.zeros((_SUBLANE, d_out_p), jnp.float32)
    for row, v in enumerate((b1, b2, g1, be1, g2, be2)):
        params = params.at[row, :D_out].set(jnp.reshape(v, (-1,)).astype(jnp.float32))

    return {"w1p": w1p, "w2p": w2p, "params": params,
            "d_in": D_in, "d_out": D_out}


def _build_pallas_call(out_dtype, B, d_in_p, d_out_p, tb, d_out, vmem_limit,
                       single_buffer_weights):
    if single_buffer_weights:
        const2d = lambda shape: pl.BlockSpec(shape, lambda i: (0, 0),
                                             pipeline_mode=pl.Buffered(1))
    else:
        const2d = lambda shape: pl.BlockSpec(shape, lambda i: (0, 0))

    return pl.pallas_call(
        functools.partial(residual_block_kernel, d_out=d_out),
        out_shape=jax.ShapeDtypeStruct((B, d_out_p), out_dtype),
        grid_spec=pltpu.PrefetchScalarGridSpec(
            num_scalar_prefetch=0,
            grid=(pl.cdiv(B, tb),),
            in_specs=[
                pl.BlockSpec((tb, d_in_p), lambda i: (i, 0)),   # x batch tile (bf16)
                const2d((d_in_p, d_out_p)),                     # W1 (resident)
                const2d((d_out_p, d_out_p)),                    # W2 (resident)
                const2d((_SUBLANE, d_out_p)),                   # packed bias / LN params
            ],
            out_specs=pl.BlockSpec((tb, d_out_p), lambda i: (i, 0)),
        ),
        compiler_params=pltpu.CompilerParams(
            dimension_semantics=("parallel",),
            vmem_limit_bytes=vmem_limit,
        ),
    )


def residual_block_apply(x, prep, *, tb=None):
    """x: (B, D_in) float. prep: output of prepare_residual_block_params."""
    w1p, w2p, params = prep["w1p"], prep["w2p"], prep["params"]
    D_in, D_out = prep["d_in"], prep["d_out"]
    B, d_in = x.shape
    assert d_in == D_in, "input feature dim mismatch"
    d_in_p, d_out_p = w1p.shape
    in_dtype = w1p.dtype
    in_isz = jnp.dtype(in_dtype).itemsize
    out_isz = jnp.dtype(x.dtype).itemsize

    vmem_cap, kind = _tpu_info()
    multi_tc = any(t in kind for t in ("v7", "v4", "v5p"))

    if tb is None:
        tb = _choose_tb(B, d_in_p, d_out_p, in_isz, out_isz, vmem_cap, multi_tc)
    tb = max(_SUBLANE, _round_up(int(tb), _SUBLANE))

    # Lane-pad + cast x once (no batch padding: the grid handles a ragged last block).
    if d_in_p == D_in and x.dtype == in_dtype:
        xp = x
    elif d_in_p == D_in:
        xp = x.astype(in_dtype)
    else:
        xp = jnp.zeros((B, d_in_p), in_dtype).at[:, :D_in].set(x.astype(in_dtype))

    # VMEM estimate: single-buffered resident weights + double-buffered streamed
    # tiles + f32 intermediates.  No extra 2x hedge; clamp to ~90% of physical VMEM.
    resident = (d_in_p + d_out_p) * d_out_p * in_isz + _SUBLANE * d_out_p * 4
    streamed = 2 * tb * d_in_p * in_isz + 2 * tb * d_out_p * out_isz
    interm = 6 * tb * d_out_p * 4
    est = resident + streamed + interm
    vmem_limit = int(min(max(est + (8 << 20), 32 << 20), int(vmem_cap * 0.9)))

    args = (xp, w1p, w2p, params)
    try:
        out_p = _build_pallas_call(x.dtype, B, d_in_p, d_out_p, tb, D_out,
                                   vmem_limit, single_buffer_weights=True)(*args)
    except Exception:
        # Fallback if this jax build rejects pipeline_mode=pl.Buffered(1).
        out_p = _build_pallas_call(x.dtype, B, d_in_p, d_out_p, tb, D_out,
                                   vmem_limit, single_buffer_weights=False)(*args)

    return out_p if d_out_p == D_out else out_p[:, :D_out]


def residual_block(x, w1, b1, w2, b2, g1, be1, g2, be2, *, tb=None,
                   weight_dtype=jnp.bfloat16):
    """Convenience one-shot wrapper (prep + apply).  For repeated forwards, call
    prepare_residual_block_params once and reuse it with residual_block_apply."""
    prep = prepare_residual_block_params(w1, b1, w2, b2, g1, be1, g2, be2,
                                         weight_dtype=weight_dtype)
    return residual_block_apply(x, prep, tb=tb)


# ---------------------------------------------------------------------------
# References (pure JAX) for the correctness check in __main__.
# ---------------------------------------------------------------------------
def _ln_ref(v, gamma, beta, d):
    mean = jnp.sum(v, axis=-1, keepdims=True) * (1.0 / d)
    ctr = v - mean
    var = jnp.sum(ctr * ctr, axis=-1, keepdims=True) * (1.0 / d)
    return ctr * lax.rsqrt(var + LN_EPS) * gamma + beta


def reference_forward_f32(x, w1, b1, w2, b2, g1, be1, g2, be2):
    d = w1.shape[1]
    z = x @ w1 + b1
    h = jnp.maximum(_ln_ref(z, g1, be1, d), 0.0)
    out = h @ w2 + b2
    out = _ln_ref(out, g2, be2, d) + z
    return jnp.maximum(out, 0.0)


def reference_forward_bf16(x, w1, b1, w2, b2, g1, be1, g2, be2):
    d = w1.shape[1]
    bf16 = jnp.bfloat16
    z = jnp.dot(x.astype(bf16), w1.astype(bf16),
                preferred_element_type=jnp.float32) + b1
    h = jnp.maximum(_ln_ref(z, g1, be1, d), 0.0)
    out = jnp.dot(h.astype(bf16), w2.astype(bf16),
                  preferred_element_type=jnp.float32) + b2
    out = _ln_ref(out, g2, be2, d) + z
    return jnp.maximum(out, 0.0)


if __name__ == "__main__":
    key = jax.random.PRNGKey(0)
    B, D_in, D_out = 16, 32, 64
    k = jax.random.split(key, 5)

    x = jax.random.normal(k[0], (B, D_in), dtype=jnp.float32)

    # Deterministic parameter init mimicking nn.Linear (uniform +-1/sqrt(fan_in)),
    # stored pre-transposed as (in, out).
    lim1 = 1.0 / jnp.sqrt(jnp.float32(D_in))
    lim2 = 1.0 / jnp.sqrt(jnp.float32(D_out))
    w1 = jax.random.uniform(k[1], (D_in, D_out), jnp.float32, -lim1, lim1)
    b1 = jax.random.uniform(k[2], (1, D_out), jnp.float32, -lim1, lim1)
    w2 = jax.random.uniform(k[3], (D_out, D_out), jnp.float32, -lim2, lim2)
    b2 = jax.random.uniform(k[4], (1, D_out), jnp.float32, -lim2, lim2)

    # LayerNorm params (PyTorch init: gamma=1, beta=0)
    g1 = jnp.ones((1, D_out), jnp.float32)
    be1 = jnp.zeros((1, D_out), jnp.float32)
    g2 = jnp.ones((1, D_out), jnp.float32)
    be2 = jnp.zeros((1, D_out), jnp.float32)

    # Parameter prep hoisted out of the per-forward path (done once).
    prep = prepare_residual_block_params(w1, b1, w2, b2, g1, be1, g2, be2)

    out = jax.block_until_ready(residual_block_apply(x, prep))
    assert out.shape == (B, D_out)

    # Tight check vs a reference using the same bf16-MXU / f32-accumulate numerics.
    ref_bf16 = reference_forward_bf16(x, w1, b1, w2, b2, g1, be1, g2, be2)
    assert jnp.allclose(out, ref_bf16, atol=2e-3, rtol=2e-3), "mismatch vs bf16 ref"

    # Loose sanity check vs the pure-f32 (PyTorch-equivalent) reference.
    ref_f32 = reference_forward_f32(x, w1, b1, w2, b2, g1, be1, g2, be2)
    assert jnp.allclose(out, ref_f32, atol=5e-2, rtol=5e-2), "mismatch vs f32 ref"

    print("KERNEL_OK")
</pallas_src>

<mosaic_0001>
module attributes {stable_mosaic.version = 11 : i64} {
  func.func @residual_block_kernel(%arg0: i32, %arg1: memref<16x128xbf16, #tpu.memory_space<vmem>>, %arg2: memref<128x128xbf16, #tpu.memory_space<vmem>>, %arg3: memref<128x128xbf16, #tpu.memory_space<vmem>>, %arg4: memref<8x128xf32, #tpu.memory_space<vmem>>, %arg5: memref<16x128xf32, #tpu.memory_space<vmem>>) attributes {dimension_semantics = [#tpu.dimension_semantics<parallel>], iteration_bounds = array<i64: 1>, scalar_prefetch = 0 : i64, scratch_operands = 0 : i64, tpu.core_type = #tpu.core_type<tc>, window_params = [{transform_indices = @transform_0, window_bounds = array<i64: 16, 128>}, {pipeline_mode = #tpu.pipeline_mode<synchronous>, transform_indices = @transform_1, window_bounds = array<i64: 128, 128>}, {pipeline_mode = #tpu.pipeline_mode<synchronous>, transform_indices = @transform_2, window_bounds = array<i64: 128, 128>}, {pipeline_mode = #tpu.pipeline_mode<synchronous>, transform_indices = @transform_3, window_bounds = array<i64: 8, 128>}, {transform_indices = @transform_4, window_bounds = array<i64: 16, 128>}]} {
    %c0 = arith.constant 0 : index
    %c0_0 = arith.constant 0 : index
    %0 = vector.load %arg4[%c0, %c0_0] : memref<8x128xf32, #tpu.memory_space<vmem>>, vector<8x128xf32>
    %1 = vector.extract_strided_slice %0 {offsets = [0, 0], sizes = [1, 128], strides = [1, 1]} : vector<8x128xf32> to vector<1x128xf32>
    %2 = vector.extract_strided_slice %0 {offsets = [1, 0], sizes = [1, 128], strides = [1, 1]} : vector<8x128xf32> to vector<1x128xf32>
    %3 = vector.extract_strided_slice %0 {offsets = [2, 0], sizes = [1, 128], strides = [1, 1]} : vector<8x128xf32> to vector<1x128xf32>
    %4 = vector.extract_strided_slice %0 {offsets = [3, 0], sizes = [1, 128], strides = [1, 1]} : vector<8x128xf32> to vector<1x128xf32>
    %5 = vector.extract_strided_slice %0 {offsets = [4, 0], sizes = [1, 128], strides = [1, 1]} : vector<8x128xf32> to vector<1x128xf32>
    %6 = vector.extract_strided_slice %0 {offsets = [5, 0], sizes = [1, 128], strides = [1, 1]} : vector<8x128xf32> to vector<1x128xf32>
    %c0_1 = arith.constant 0 : index
    %c0_2 = arith.constant 0 : index
    %7 = vector.load %arg1[%c0_1, %c0_2] : memref<16x128xbf16, #tpu.memory_space<vmem>>, vector<16x128xbf16>
    %c0_3 = arith.constant 0 : index
    %c0_4 = arith.constant 0 : index
    %8 = vector.load %arg2[%c0_3, %c0_4] : memref<128x128xbf16, #tpu.memory_space<vmem>>, vector<128x128xbf16>
    %cst = arith.constant dense<0.000000e+00> : vector<16x128xf32>
    %9 = tpu.matmul %7, %8, %cst {dimension_numbers = #tpu.dot_dimension_numbers<[1], [0], [0], [1], [0, 0, 1, 1], [], []>} : vector<16x128xbf16>, vector<128x128xbf16>, vector<16x128xf32> -> vector<16x128xf32>
    %10 = vector.broadcast %1 : vector<1x128xf32> to vector<16x128xf32>
    %11 = arith.addf %9, %10 : vector<16x128xf32>
    %cst_5 = arith.constant dense<0.000000e+00> : vector<16xf32>
    %12 = vector.multi_reduction <add>, %11, %cst_5 [1] : vector<16x128xf32> to vector<16xf32>
    %13 = vector.shape_cast %12 : vector<16xf32> to vector<16x1xf32>
    %cst_6 = arith.constant 1.562500e-02 : f32
    %14 = vector.broadcast %cst_6 : f32 to vector<16x1xf32>
    %15 = arith.mulf %13, %14 : vector<16x1xf32>
    %16 = arith.mulf %11, %11 : vector<16x128xf32>
    %cst_7 = arith.constant dense<0.000000e+00> : vector<16xf32>
    %17 = vector.multi_reduction <add>, %16, %cst_7 [1] : vector<16x128xf32> to vector<16xf32>
    %18 = vector.shape_cast %17 : vector<16xf32> to vector<16x1xf32>
    %cst_8 = arith.constant 1.562500e-02 : f32
    %19 = vector.broadcast %cst_8 : f32 to vector<16x1xf32>
    %20 = arith.mulf %18, %19 : vector<16x1xf32>
    %21 = arith.mulf %15, %15 : vector<16x1xf32>
    %22 = arith.subf %20, %21 : vector<16x1xf32>
    %cst_9 = arith.constant 0.000000e+00 : f32
    %23 = vector.broadcast %cst_9 : f32 to vector<16x1xf32>
    %24 = arith.maximumf %22, %23 : vector<16x1xf32>
    %25 = vector.broadcast %15 : vector<16x1xf32> to vector<16x128xf32>
    %26 = arith.subf %11, %25 : vector<16x128xf32>
    %cst_10 = arith.constant 9.99999974E-6 : f32
    %27 = vector.broadcast %cst_10 : f32 to vector<16x1xf32>
    %28 = arith.addf %24, %27 : vector<16x1xf32>
    %29 = math.rsqrt %28 : vector<16x1xf32>
    %30 = vector.broadcast %29 : vector<16x1xf32> to vector<16x128xf32>
    %31 = arith.mulf %26, %30 : vector<16x128xf32>
    %32 = vector.broadcast %3 : vector<1x128xf32> to vector<16x128xf32>
    %33 = arith.mulf %31, %32 : vector<16x128xf32>
    %34 = vector.broadcast %4 : vector<1x128xf32> to vector<16x128xf32>
    %35 = arith.addf %33, %34 : vector<16x128xf32>
    %cst_11 = arith.constant 0.000000e+00 : f32
    %36 = vector.broadcast %cst_11 : f32 to vector<16x128xf32>
    %37 = arith.maximumf %35, %36 : vector<16x128xf32>
    %38 = arith.truncf %37 : vector<16x128xf32> to vector<16x128xbf16>
    %c0_12 = arith.constant 0 : index
    %c0_13 = arith.constant 0 : index
    %39 = vector.load %arg3[%c0_12, %c0_13] : memref<128x128xbf16, #tpu.memory_space<vmem>>, vector<128x128xbf16>
    %cst_14 = arith.constant dense<0.000000e+00> : vector<16x128xf32>
    %40 = tpu.matmul %38, %39, %cst_14 {dimension_numbers = #tpu.dot_dimension_numbers<[1], [0], [0], [1], [0, 0, 1, 1], [], []>} : vector<16x128xbf16>, vector<128x128xbf16>, vector<16x128xf32> -> vector<16x128xf32>
    %41 = vector.broadcast %2 : vector<1x128xf32> to vector<16x128xf32>
    %42 = arith.addf %40, %41 : vector<16x128xf32>
    %cst_15 = arith.constant dense<0.000000e+00> : vector<16xf32>
    %43 = vector.multi_reduction <add>, %42, %cst_15 [1] : vector<16x128xf32> to vector<16xf32>
    %44 = vector.shape_cast %43 : vector<16xf32> to vector<16x1xf32>
    %cst_16 = arith.constant 1.562500e-02 : f32
    %45 = vector.broadcast %cst_16 : f32 to vector<16x1xf32>
    %46 = arith.mulf %44, %45 : vector<16x1xf32>
    %47 = arith.mulf %42, %42 : vector<16x128xf32>
    %cst_17 = arith.constant dense<0.000000e+00> : vector<16xf32>
    %48 = vector.multi_reduction <add>, %47, %cst_17 [1] : vector<16x128xf32> to vector<16xf32>
    %49 = vector.shape_cast %48 : vector<16xf32> to vector<16x1xf32>
    %cst_18 = arith.constant 1.562500e-02 : f32
    %50 = vector.broadcast %cst_18 : f32 to vector<16x1xf32>
    %51 = arith.mulf %49, %50 : vector<16x1xf32>
    %52 = arith.mulf %46, %46 : vector<16x1xf32>
    %53 = arith.subf %51, %52 : vector<16x1xf32>
    %cst_19 = arith.constant 0.000000e+00 : f32
    %54 = vector.broadcast %cst_19 : f32 to vector<16x1xf32>
    %55 = arith.maximumf %53, %54 : vector<16x1xf32>
    %56 = vector.broadcast %46 : vector<16x1xf32> to vector<16x128xf32>
    %57 = arith.subf %42, %56 : vector<16x128xf32>
    %cst_20 = arith.constant 9.99999974E-6 : f32
    %58 = vector.broadcast %cst_20 : f32 to vector<16x1xf32>
    %59 = arith.addf %55, %58 : vector<16x1xf32>
    %60 = math.rsqrt %59 : vector<16x1xf32>
    %61 = vector.broadcast %60 : vector<16x1xf32> to vector<16x128xf32>
    %62 = arith.mulf %57, %61 : vector<16x128xf32>
    %63 = vector.broadcast %5 : vector<1x128xf32> to vector<16x128xf32>
    %64 = arith.mulf %62, %63 : vector<16x128xf32>
    %65 = vector.broadcast %6 : vector<1x128xf32> to vector<16x128xf32>
    %66 = arith.addf %64, %65 : vector<16x128xf32>
    %67 = arith.addf %66, %11 : vector<16x128xf32>
    %cst_21 = arith.constant 0.000000e+00 : f32
    %68 = vector.broadcast %cst_21 : f32 to vector<16x128xf32>
    %69 = arith.maximumf %67, %68 : vector<16x128xf32>
    %c0_22 = arith.constant 0 : index
    %c0_23 = arith.constant 0 : index
    %70 = vector.load %arg5[%c0_22, %c0_23] : memref<16x128xf32, #tpu.memory_space<vmem>>, vector<16x128xf32>
    tpu.vector_store %arg5[%c0_22, %c0_23], %69 {strides = array<i32>} : memref<16x128xf32, #tpu.memory_space<vmem>>, vector<16x128xf32>,
    return
  }
  func.func @transform_0(%arg0: i32) -> (i32, i32) {
    %c0_i32 = arith.constant 0 : i32
    %c0_i32_0 = arith.constant 0 : i32
    return %arg0, %c0_i32 : i32, i32
  }
  func.func @transform_1(%arg0: i32) -> (i32, i32) {
    %c0_i32 = arith.constant 0 : i32
    %c0_i32_0 = arith.constant 0 : i32
    %c0_i32_1 = arith.constant 0 : i32
    return %c0_i32, %c0_i32_0 : i32, i32
  }
  func.func @transform_2(%arg0: i32) -> (i32, i32) {
    %c0_i32 = arith.constant 0 : i32
    %c0_i32_0 = arith.constant 0 : i32
    %c0_i32_1 = arith.constant 0 : i32
    return %c0_i32, %c0_i32_0 : i32, i32
  }
  func.func @transform_3(%arg0: i32) -> (i32, i32) {
    %c0_i32 = arith.constant 0 : i32
    %c0_i32_0 = arith.constant 0 : i32
    %c0_i32_1 = arith.constant 0 : i32
    return %c0_i32, %c0_i32_0 : i32, i32
  }
  func.func @transform_4(%arg0: i32) -> (i32, i32) {
    %c0_i32 = arith.constant 0 : i32
    %c0_i32_0 = arith.constant 0 : i32
    return %arg0, %c0_i32 : i32, i32
  }
}

module attributes {stable_mosaic.version = 11 : i64} {
  func.func @residual_block_kernel(%arg0: i32, %arg1: memref<16x128xbf16, #tpu.memory_space<vmem>>, %arg2: memref<128x128xbf16, #tpu.memory_space<vmem>>, %arg3: memref<128x128xbf16, #tpu.memory_space<vmem>>, %arg4: memref<8x128xf32, #tpu.memory_space<vmem>>, %arg5: memref<16x128xf32, #tpu.memory_space<vmem>>) attributes {dimension_semantics = [#tpu.dimension_semantics<parallel>], iteration_bounds = array<i64: 1>, scalar_prefetch = 0 : i64, scratch_operands = 0 : i64, tpu.core_type = #tpu.core_type<tc>, window_params = [{transform_indices = @transform_0, window_bounds = array<i64: 16, 128>}, {pipeline_mode = #tpu.pipeline_mode<synchronous>, transform_indices = @transform_1, window_bounds = array<i64: 128, 128>}, {pipeline_mode = #tpu.pipeline_mode<synchronous>, transform_indices = @transform_2, window_bounds = array<i64: 128, 128>}, {pipeline_mode = #tpu.pipeline_mode<synchronous>, transform_indices = @transform_3, window_bounds = array<i64: 8, 128>}, {transform_indices = @transform_4, window_bounds = array<i64: 16, 128>}]} {
    %c0 = arith.constant 0 : index
    %c0_0 = arith.constant 0 : index
    %0 = vector.load %arg4[%c0, %c0_0] : memref<8x128xf32, #tpu.memory_space<vmem>>, vector<8x128xf32>
    %1 = vector.extract_strided_slice %0 {offsets = [0, 0], sizes = [1, 128], strides = [1, 1]} : vector<8x128xf32> to vector<1x128xf32>
    %2 = vector.extract_strided_slice %0 {offsets = [1, 0], sizes = [1, 128], strides = [1, 1]} : vector<8x128xf32> to vector<1x128xf32>
    %3 = vector.extract_strided_slice %0 {offsets = [2, 0], sizes = [1, 128], strides = [1, 1]} : vector<8x128xf32> to vector<1x128xf32>
    %4 = vector.extract_strided_slice %0 {offsets = [3, 0], sizes = [1, 128], strides = [1, 1]} : vector<8x128xf32> to vector<1x128xf32>
    %5 = vector.extract_strided_slice %0 {offsets = [4, 0], sizes = [1, 128], strides = [1, 1]} : vector<8x128xf32> to vector<1x128xf32>
    %6 = vector.extract_strided_slice %0 {offsets = [5, 0], sizes = [1, 128], strides = [1, 1]} : vector<8x128xf32> to vector<1x128xf32>
    %c0_1 = arith.constant 0 : index
    %c0_2 = arith.constant 0 : index
    %7 = vector.load %arg1[%c0_1, %c0_2] : memref<16x128xbf16, #tpu.memory_space<vmem>>, vector<16x128xbf16>
    %c0_3 = arith.constant 0 : index
    %c0_4 = arith.constant 0 : index
    %8 = vector.load %arg2[%c0_3, %c0_4] : memref<128x128xbf16, #tpu.memory_space<vmem>>, vector<128x128xbf16>
    %cst = arith.constant dense<0.000000e+00> : vector<16x128xf32>
    %9 = tpu.matmul %7, %8, %cst {dimension_numbers = #tpu.dot_dimension_numbers<[1], [0], [0], [1], [0, 0, 1, 1], [], []>} : vector<16x128xbf16>, vector<128x128xbf16>, vector<16x128xf32> -> vector<16x128xf32>
    %10 = vector.broadcast %1 : vector<1x128xf32> to vector<16x128xf32>
    %11 = arith.addf %9, %10 : vector<16x128xf32>
    %cst_5 = arith.constant dense<0.000000e+00> : vector<16xf32>
    %12 = vector.multi_reduction <add>, %11, %cst_5 [1] : vector<16x128xf32> to vector<16xf32>
    %13 = vector.shape_cast %12 : vector<16xf32> to vector<16x1xf32>
    %cst_6 = arith.constant 1.562500e-02 : f32
    %14 = vector.broadcast %cst_6 : f32 to vector<16x1xf32>
    %15 = arith.mulf %13, %14 : vector<16x1xf32>
    %16 = arith.mulf %11, %11 : vector<16x128xf32>
    %cst_7 = arith.constant dense<0.000000e+00> : vector<16xf32>
    %17 = vector.multi_reduction <add>, %16, %cst_7 [1] : vector<16x128xf32> to vector<16xf32>
    %18 = vector.shape_cast %17 : vector<16xf32> to vector<16x1xf32>
    %cst_8 = arith.constant 1.562500e-02 : f32
    %19 = vector.broadcast %cst_8 : f32 to vector<16x1xf32>
    %20 = arith.mulf %18, %19 : vector<16x1xf32>
    %21 = arith.mulf %15, %15 : vector<16x1xf32>
    %22 = arith.subf %20, %21 : vector<16x1xf32>
    %cst_9 = arith.constant 0.000000e+00 : f32
    %23 = vector.broadcast %cst_9 : f32 to vector<16x1xf32>
    %24 = arith.maximumf %22, %23 : vector<16x1xf32>
    %25 = vector.broadcast %15 : vector<16x1xf32> to vector<16x128xf32>
    %26 = arith.subf %11, %25 : vector<16x128xf32>
    %cst_10 = arith.constant 9.99999974E-6 : f32
    %27 = vector.broadcast %cst_10 : f32 to vector<16x1xf32>
    %28 = arith.addf %24, %27 : vector<16x1xf32>
    %29 = math.rsqrt %28 : vector<16x1xf32>
    %30 = vector.broadcast %29 : vector<16x1xf32> to vector<16x128xf32>
    %31 = arith.mulf %26, %30 : vector<16x128xf32>
    %32 = vector.broadcast %3 : vector<1x128xf32> to vector<16x128xf32>
    %33 = arith.mulf %31, %32 : vector<16x128xf32>
    %34 = vector.broadcast %4 : vector<1x128xf32> to vector<16x128xf32>
    %35 = arith.addf %33, %34 : vector<16x128xf32>
    %cst_11 = arith.constant 0.000000e+00 : f32
    %36 = vector.broadcast %cst_11 : f32 to vector<16x128xf32>
    %37 = arith.maximumf %35, %36 : vector<16x128xf32>
    %38 = arith.truncf %37 : vector<16x128xf32> to vector<16x128xbf16>
    %c0_12 = arith.constant 0 : index
    %c0_13 = arith.constant 0 : index
    %39 = vector.load %arg3[%c0_12, %c0_13] : memref<128x128xbf16, #tpu.memory_space<vmem>>, vector<128x128xbf16>
    %cst_14 = arith.constant dense<0.000000e+00> : vector<16x128xf32>
    %40 = tpu.matmul %38, %39, %cst_14 {dimension_numbers = #tpu.dot_dimension_numbers<[1], [0], [0], [1], [0, 0, 1, 1], [], []>} : vector<16x128xbf16>, vector<128x128xbf16>, vector<16x128xf32> -> vector<16x128xf32>
    %41 = vector.broadcast %2 : vector<1x128xf32> to vector<16x128xf32>
    %42 = arith.addf %40, %41 : vector<16x128xf32>
    %cst_15 = arith.constant dense<0.000000e+00> : vector<16xf32>
    %43 = vector.multi_reduction <add>, %42, %cst_15 [1] : vector<16x128xf32> to vector<16xf32>
    %44 = vector.shape_cast %43 : vector<16xf32> to vector<16x1xf32>
    %cst_16 = arith.constant 1.562500e-02 : f32
    %45 = vector.broadcast %cst_16 : f32 to vector<16x1xf32>
    %46 = arith.mulf %44, %45 : vector<16x1xf32>
    %47 = arith.mulf %42, %42 : vector<16x128xf32>
    %cst_17 = arith.constant dense<0.000000e+00> : vector<16xf32>
    %48 = vector.multi_reduction <add>, %47, %cst_17 [1] : vector<16x128xf32> to vector<16xf32>
    %49 = vector.shape_cast %48 : vector<16xf32> to vector<16x1xf32>
    %cst_18 = arith.constant 1.562500e-02 : f32
    %50 = vector.broadcast %cst_18 : f32 to vector<16x1xf32>
    %51 = arith.mulf %49, %50 : vector<16x1xf32>
    %52 = arith.mulf %46, %46 : vector<16x1xf32>
    %53 = arith.subf %51, %52 : vector<16x1xf32>
    %cst_19 = arith.constant 0.000000e+00 : f32
    %54 = vector.broadcast %cst_19 : f32 to vector<16x1xf32>
    %55 = arith.maximumf %53, %54 : vector<16x1xf32>
    %56 = vector.broadcast %46 : vector<16x1xf32> to vector<16x128xf32>
    %57 = arith.subf %42, %56 : vector<16x128xf32>
    %cst_20 = arith.constant 9.99999974E-6 : f32
    %58 = vector.broadcast %cst_20 : f32 to vector<16x1xf32>
    %59 = arith.addf %55, %58 : vector<16x1xf32>
    %60 = math.rsqrt %59 : vector<16x1xf32>
    %61 = vector.broadcast %60 : vector<16x1xf32> to vector<16x128xf32>
    %62 = arith.mulf %57, %61 : vector<16x128xf32>
    %63 = vector.broadcast %5 : vector<1x128xf32> to vector<16x128xf32>
    %64 = arith.mulf %62, %63 : vector<16x128xf32>
    %65 = vector.broadcast %6 : vector<1x128xf32> to vector<16x128xf32>
    %66 = arith.addf %64, %65 : vector<16x128xf32>
    %67 = arith.addf %66, %11 : vector<16x128xf32>
    %cst_21 = arith.constant 0.000000e+00 : f32
    %68 = vector.broadcast %cst_21 : f32 to vector<16x128xf32>
    %69 = arith.maximumf %67, %68 : vector<16x128xf32>
    %c0_22 = arith.constant 0 : index
    %c0_23 = arith.constant 0 : index
    %70 = vector.load %arg5[%c0_22, %c0_23] : memref<16x128xf32, #tpu.memory_space<vmem>>, vector<16x128xf32>
    tpu.vector_store %arg5[%c0_22, %c0_23], %69 {strides = array<i32>} : memref<16x128xf32, #tpu.memory_space<vmem>>, vector<16x128xf32>,
    return
  }
  func.func @transform_0(%arg0: i32) -> (i32, i32) {
    %c0_i32 = arith.constant 0 : i32
    %c0_i32_0 = arith.constant 0 : i32
    return %arg0, %c0_i32 : i32, i32
  }
  func.func @transform_1(%arg0: i32) -> (i32, i32) {
    %c0_i32 = arith.constant 0 : i32
    %c0_i32_0 = arith.constant 0 : i32
    %c0_i32_1 = arith.constant 0 : i32
    return %c0_i32, %c0_i32_0 : i32, i32
  }
  func.func @transform_2(%arg0: i32) -> (i32, i32) {
    %c0_i32 = arith.constant 0 : i32
    %c0_i32_0 = arith.constant 0 : i32
    %c0_i32_1 = arith.constant 0 : i32
    return %c0_i32, %c0_i32_0 : i32, i32
  }
  func.func @transform_3(%arg0: i32) -> (i32, i32) {
    %c0_i32 = arith.constant 0 : i32
    %c0_i32_0 = arith.constant 0 : i32
    %c0_i32_1 = arith.constant 0 : i32
    return %c0_i32, %c0_i32_0 : i32, i32
  }
  func.func @transform_4(%arg0: i32) -> (i32, i32) {
    %c0_i32 = arith.constant 0 : i32
    %c0_i32_0 = arith.constant 0 : i32
    return %arg0, %c0_i32 : i32, i32
  }
}

</mosaic_0001>

<llo_original>
// kernel: tpu_custom_call.1
$region0: #{tpu_custom_call.1}
  #allocation0 [shape = 'u32[]', space=smem, size = 0x4, offset = 0x4, fixed_abs, tag = 'smem constant byte address 0x4 - core index']
  #allocation1 [shape = 'u32[144,128]{1,0:T(1,128)}', space=vmem, size = 0x12000, scoped, tag = 'internal scratch']
  %s0 = inlined_call_operand.hbm [shape: bf16[16,128], index: 0, kind: input, shape index: {}]
  %s1 = inlined_call_operand.hbm [shape: bf16[128,128], index: 1, kind: input, shape index: {}]
  %s2 = inlined_call_operand.hbm [shape: bf16[128,128], index: 2, kind: input, shape index: {}]
  %s3 = inlined_call_operand.vmem [shape: f32[8,128], index: 3, kind: input, shape index: {}]
  %s4 = inlined_call_operand.hbm [shape: f32[16,128], index: 4, kind: output, shape index: {}]
  %s5 = sld [smem:[#allocation0]]
  $region38: #{tpu_custom_call.1} parent=0
    _
  %s7 = ssub.s32 1, %s5
  %s8 = scalar_select 0, %s7, %s5
  $region1: #{tpu_custom_call.1} parent=0
    #allocation2 [shape = 'u8[4096]{0}', space=vmem, size = 0x1000, scoped, tag = 'input window, operand 0, single buffered']
    #allocation3 [shape = 's32[1]{0}', space=sflag, size = 0x4, scoped, tag = 'scoped memory for tpu_custom_call.1']
    #allocation4 [shape = 's32[1]{0}', space=sflag, size = 0x4, scoped, tag = 'scoped memory for tpu_custom_call.1']
    #allocation5 [shape = 'u8[32768]{0}', space=vmem, size = 0x8000, scoped, tag = 'input window, operand 1, single buffered']
    #allocation6 [shape = 's32[1]{0}', space=sflag, size = 0x4, scoped, tag = 'scoped memory for tpu_custom_call.1']
    #allocation7 [shape = 'u8[32768]{0}', space=vmem, size = 0x8000, scoped, tag = 'input window, operand 2, single buffered']
    #allocation8 [shape = 'u8[8192]{0}', space=vmem, size = 0x2000, scoped, tag = 'output window, operand 0, single buffered']
    %9 = vsyncpa [#allocation3], 0
    %10 = vsyncpa [#allocation6], 0
    %11 = vsyncpa [#allocation4], 0
    // Predicated region
    $region2: #{tpu_custom_call.1} parent=1 // pred_check
      _
    $region3: #{tpu_custom_call.1} parent=1 // pred_check_branch
      %13 = sbr.rel (0) target = $region5
    $region4: #{tpu_custom_call.1} parent=1 // pred_region
      %s15 = ssub.s32 128, 128
      %16 = vsyncadd [#allocation3], %s15
      %s17 = sshll.u32 [#allocation2], 4
      %s18 = int_to_ptr.vmem [resolvable:$true] %s17
      %23 = dma.hbm_to_vmem [thread:$0]  %s0, 128, %s18, [#allocation3], 64, 64, 4
    $region5: #{tpu_custom_call.1} parent=1 // pred_fallthru
      _
    // Predicated region
    $region6: #{tpu_custom_call.1} parent=1 // pred_check
      _
    $region7: #{tpu_custom_call.1} parent=1 // pred_check_branch
      %25 = sbr.rel (0) target = $region9
    $region8: #{tpu_custom_call.1} parent=1 // pred_region
      %s27 = ssub.s32 1024, 1024
      %28 = vsyncadd [#allocation6], %s27
      %s29 = sshll.u32 [#allocation5], 4
      %s30 = int_to_ptr.vmem [resolvable:$true] %s29
      %35 = dma.hbm_to_vmem [thread:$0]  %s1, 1024, %s30, [#allocation6], 64, 64, 4
    $region9: #{tpu_custom_call.1} parent=1 // pred_fallthru
      _
    // Predicated region
    $region10: #{tpu_custom_call.1} parent=1 // pred_check
      _
    $region11: #{tpu_custom_call.1} parent=1 // pred_check_branch
      %37 = sbr.rel (0) target = $region13
    $region12: #{tpu_custom_call.1} parent=1 // pred_region
      %s39 = ssub.s32 1024, 1024
      %40 = vsyncadd [#allocation6], %s39
      %s41 = sshll.u32 [#allocation7], 4
      %s42 = int_to_ptr.vmem [resolvable:$true] %s41
      %47 = dma.hbm_to_vmem [thread:$0]  %s2, 1024, %s42, [#allocation6], 64, 64, 4
    $region13: #{tpu_custom_call.1} parent=1 // pred_fallthru
      _
    // Predicated region
    $region14: #{tpu_custom_call.1} parent=1 // pred_check
      _
    $region15: #{tpu_custom_call.1} parent=1 // pred_check_branch
      %49 = sbr.rel (0) target = $region17
    $region16: #{tpu_custom_call.1} parent=1 // pred_region
      _
    $region17: #{tpu_custom_call.1} parent=1 // pred_fallthru
      _
    // Predicated region
    $region18: #{tpu_custom_call.1} parent=1 // pred_check
      _
    $region19: #{tpu_custom_call.1} parent=1 // pred_check_branch
      %51 = sbr.rel (0) target = $region21
    $region20: #{tpu_custom_call.1} parent=1 // pred_region
      %52 = dma.done [#allocation3], 128
    $region21: #{tpu_custom_call.1} parent=1 // pred_fallthru
      _
    // Predicated region
    $region22: #{tpu_custom_call.1} parent=1 // pred_check
      _
    $region23: #{tpu_custom_call.1} parent=1 // pred_check_branch
      %54 = sbr.rel (0) target = $region25
    $region24: #{tpu_custom_call.1} parent=1 // pred_region
      %55 = dma.done [#allocation6], 1024
    $region25: #{tpu_custom_call.1} parent=1 // pred_fallthru
      _
    // Predicated region
    $region26: #{tpu_custom_call.1} parent=1 // pred_check
      _
    $region27: #{tpu_custom_call.1} parent=1 // pred_check_branch
      %57 = sbr.rel (0) target = $region29
    $region28: #{tpu_custom_call.1} parent=1 // pred_region
      %58 = dma.done [#allocation6], 1024
    $region29: #{tpu_custom_call.1} parent=1 // pred_fallthru
      _
    %v60 = vld [vmem:[%s3] sm:$0xff]
    %v61 = vld [vmem:[#allocation2] sm:$0xf]
    %v62 = vld [vmem:[#allocation2 + $0x4] sm:$0xf]
    %v63 = vld [vmem:[#allocation5] sm:$0xf]
    %v64 = vld [vmem:[#allocation5 + $0x4] sm:$0xf]
    %v65 = vld [vmem:[#allocation5 + $0x8] sm:$0xf]
    %v66 = vld [vmem:[#allocation5 + $0xc] sm:$0xf]
    %v67 = vld [vmem:[#allocation5 + $0x10] sm:$0xf]
    %v68 = vld [vmem:[#allocation5 + $0x14] sm:$0xf]
    %v69 = vld [vmem:[#allocation5 + $0x18] sm:$0xf]
    %v70 = vld [vmem:[#allocation5 + $0x1c] sm:$0xf]
    %v71 = vld [vmem:[#allocation5 + $0x20] sm:$0xf]
    %v72 = vld [vmem:[#allocation5 + $0x24] sm:$0xf]
    %v73 = vld [vmem:[#allocation5 + $0x28] sm:$0xf]
    %v74 = vld [vmem:[#allocation5 + $0x2c] sm:$0xf]
    %v75 = vld [vmem:[#allocation5 + $0x30] sm:$0xf]
    %v76 = vld [vmem:[#allocation5 + $0x34] sm:$0xf]
    %v77 = vld [vmem:[#allocation5 + $0x38] sm:$0xf]
    %v78 = vld [vmem:[#allocation5 + $0x3c] sm:$0xf]
    %v79 = vlaneseq
    %v80 = vshrl.u32 %v79, 7
    %v81 = vsub.s32 0, %v80
    %v82 = vrot.slane %v60, %v81
    %v85 = vunpack.c.l.b16 %v61
    %v86 = vunpack.c.l.b16 %v62
    %v87 = vpack.c.b16 %v86, %v85
    %v105 = vunpack.c.l.b16 %v63
    %v106 = vunpack.c.l.b16 %v64
    %v107 = vunpack.c.l.b16 %v65
    %v108 = vunpack.c.l.b16 %v66
    %v109 = vunpack.c.l.b16 %v67
    %v110 = vunpack.c.l.b16 %v68
    %v111 = vunpack.c.l.b16 %v69
    %v112 = vunpack.c.l.b16 %v70
    %v113 = vunpack.c.l.b16 %v71
    %v114 = vunpack.c.l.b16 %v72
    %v115 = vunpack.c.l.b16 %v73
    %v116 = vunpack.c.l.b16 %v74
    %v117 = vunpack.c.l.b16 %v75
    %v118 = vunpack.c.l.b16 %v76
    %v119 = vunpack.c.l.b16 %v77
    %v120 = vunpack.c.l.b16 %v78
    %v121 = vpack.c.b16 %v106, %v105
    %v122 = vpack.c.b16 %v108, %v107
    %v123 = vpack.c.b16 %v110, %v109
    %v124 = vpack.c.b16 %v112, %v111
    %v125 = vpack.c.b16 %v114, %v113
    %v126 = vpack.c.b16 %v116, %v115
    %v127 = vpack.c.b16 %v118, %v117
    %v128 = vpack.c.b16 %v120, %v119
    %137 = vmatprep.subr.bf16.mxu0 0
    %138 = vmatpush1.bf16.msra.mxu0 %v121
    %139 = vmatprep.subr.bf16.mxu0 0
    %140 = vmatpush1.bf16.msra.mxu0 %v122
    %141 = vmatprep.subr.bf16.mxu0 0
    %142 = vmatpush1.bf16.msra.mxu0 %v123
    %143 = vmatprep.subr.bf16.mxu0 0
    %144 = vmatpush1.bf16.msra.mxu0 %v124
    %145 = vmatprep.subr.bf16.mxu0 0
    %146 = vmatpush1.bf16.msra.mxu0 %v125
    %147 = vmatprep.subr.bf16.mxu0 0
    %148 = vmatpush1.bf16.msra.mxu0 %v126
    %149 = vmatprep.subr.bf16.mxu0 0
    %150 = vmatpush1.bf16.msra.mxu0 %v127
    %151 = vmatprep.subr.bf16.mxu0 0
    %152 = vmatpush1.bf16.msra.mxu0 %v128
    %153 = vmatprep.subr.bf16.mxu0 0
    %154 = vmatpush1.bf16.msra.mxu0 0
    %155 = vmatprep.subr.bf16.mxu0 0
    %156 = vmatpush1.bf16.msra.mxu0 0
    %157 = vmatprep.subr.bf16.mxu0 0
    %158 = vmatpush1.bf16.msra.mxu0 0
    %159 = vmatprep.subr.bf16.mxu0 0
    %160 = vmatpush1.bf16.msra.mxu0 0
    %161 = vmatprep.subr.bf16.mxu0 0
    %162 = vmatpush1.bf16.msra.mxu0 0
    %163 = vmatprep.subr.bf16.mxu0 0
    %164 = vmatpush1.bf16.msra.mxu0 0
    %165 = vmatprep.subr.bf16.mxu0 0
    %166 = vmatpush1.bf16.msra.mxu0 0
    %167 = vmatprep.subr.bf16.mxu0 0
    %168 = vmatpush1.bf16.msra.mxu0 0
    %169 = vmatprep.mubr.bf16.mxu0 0
    %170 = vmatmul.mubr.bf16.gmra.mrb[0].mxu0 %v87
    %v171 = vpop.f32.mrb[0].mxu0
    %v172 = vadd.f32 %v82, %v171
    %v173 = vpop.f32.mrb[0].mxu0
    %v174 = vpop.f32.mrb[0].mxu0
    %v175 = vadd.f32 %v82, %v174
    %v176 = vpop.f32.mrb[0].mxu0
    %177 = vdwg.mxu0
    %178 = vadd.xlane.f32.xlu0 %v172
    %v179 = vpop.xlane.xlu0 %178
    %180 = vadd.xlane.f32.xlu0 %v175
    %v181 = vpop.xlane.xlu0 %180
    %v182 = vmul.f32 %v179, 0.015625
    %v183 = vmul.f32 %v181, 0.015625
    %v184 = vmul.f32 %v172, %v172
    %v185 = vmul.f32 %v175, %v175
    %186 = vadd.xlane.f32.xlu0 %v184
    %v187 = vpop.xlane.xlu0 %186
    %188 = vadd.xlane.f32.xlu0 %v185
    %v189 = vpop.xlane.xlu0 %188
    %v190 = vmul.f32 %v187, 0.015625
    %v191 = vmul.f32 %v189, 0.015625
    %v192 = vmul.f32 %v182, %v182
    %v193 = vmul.f32 %v183, %v183
    %v194 = vsub.f32 %v190, %v192
    %v195 = vsub.f32 %v191, %v193
    %v196 = vmax.f32 %v194, 0.0
    %v197 = vmax.f32 %v195, 0.0
    %v198 = vsub.f32 %v172, %v182
    %v199 = vsub.f32 %v175, %v183
    %v200 = vadd.f32 %v196, 1e-05
    %v201 = vadd.f32 %v197, 1e-05
    %v202 = vrsqrt.pop %v200
    %v203 = vrsqrt.pop %v201
    %v204 = vmul.f32 %v198, %v202
    %v205 = vmul.f32 %v199, %v203
    %v206 = vlaneseq
    %v207 = vshrl.u32 %v206, 7
    %v208 = vsub.s32 2, %v207
    %v209 = vrot.slane %v60, %v208
    %v210 = vmul.f32 %v204, %v209
    %v211 = vmul.f32 %v205, %v209
    %v212 = vlaneseq
    %v213 = vshrl.u32 %v212, 7
    %v214 = vsub.s32 3, %v213
    %v215 = vrot.slane %v60, %v214
    %v216 = vadd.f32 %v210, %v215
    %v217 = vadd.f32 %v211, %v215
    %v218 = vmax.f32 %v216, 0.0
    %v219 = vmax.f32 %v217, 0.0
    %v220 = vpack.c.bf16 %v219, %v218
    %v221 = vld [vmem:[#allocation7] sm:$0xf]
    %v222 = vld [vmem:[#allocation7 + $0x4] sm:$0xf]
    %v223 = vld [vmem:[#allocation7 + $0x8] sm:$0xf]
    %v224 = vld [vmem:[#allocation7 + $0xc] sm:$0xf]
    %v225 = vld [vmem:[#allocation7 + $0x10] sm:$0xf]
    %v226 = vld [vmem:[#allocation7 + $0x14] sm:$0xf]
    %v227 = vld [vmem:[#allocation7 + $0x18] sm:$0xf]
    %v228 = vld [vmem:[#allocation7 + $0x1c] sm:$0xf]
    %v229 = vld [vmem:[#allocation7 + $0x20] sm:$0xf]
    %v230 = vld [vmem:[#allocation7 + $0x24] sm:$0xf]
    %v231 = vld [vmem:[#allocation7 + $0x28] sm:$0xf]
    %v232 = vld [vmem:[#allocation7 + $0x2c] sm:$0xf]
    %v233 = vld [vmem:[#allocation7 + $0x30] sm:$0xf]
    %v234 = vld [vmem:[#allocation7 + $0x34] sm:$0xf]
    %v235 = vld [vmem:[#allocation7 + $0x38] sm:$0xf]
    %v236 = vld [vmem:[#allocation7 + $0x3c] sm:$0xf]
    %v237 = vlaneseq
    %v238 = vshrl.u32 %v237, 7
    %v239 = vsub.s32 1, %v238
    %v240 = vrot.slane %v60, %v239
    %v257 = vunpack.c.l.b16 %v221
    %v258 = vunpack.c.l.b16 %v222
    %v259 = vunpack.c.l.b16 %v223
    %v260 = vunpack.c.l.b16 %v224
    %v261 = vunpack.c.l.b16 %v225
    %v262 = vunpack.c.l.b16 %v226
    %v263 = vunpack.c.l.b16 %v227
    %v264 = vunpack.c.l.b16 %v228
    %v265 = vunpack.c.l.b16 %v229
    %v266 = vunpack.c.l.b16 %v230
    %v267 = vunpack.c.l.b16 %v231
    %v268 = vunpack.c.l.b16 %v232
    %v269 = vunpack.c.l.b16 %v233
    %v270 = vunpack.c.l.b16 %v234
    %v271 = vunpack.c.l.b16 %v235
    %v272 = vunpack.c.l.b16 %v236
    %v273 = vpack.c.b16 %v258, %v257
    %v274 = vpack.c.b16 %v260, %v259
    %v275 = vpack.c.b16 %v262, %v261
    %v276 = vpack.c.b16 %v264, %v263
    %v277 = vpack.c.b16 %v266, %v265
    %v278 = vpack.c.b16 %v268, %v267
    %v279 = vpack.c.b16 %v270, %v269
    %v280 = vpack.c.b16 %v272, %v271
    %289 = vmatprep.subr.bf16.mxu0 0
    %290 = vmatpush1.bf16.msra.mxu0 %v273
    %291 = vmatprep.subr.bf16.mxu0 0
    %292 = vmatpush1.bf16.msra.mxu0 %v274
    %293 = vmatprep.subr.bf16.mxu0 0
    %294 = vmatpush1.bf16.msra.mxu0 %v275
    %295 = vmatprep.subr.bf16.mxu0 0
    %296 = vmatpush1.bf16.msra.mxu0 %v276
    %297 = vmatprep.subr.bf16.mxu0 0
    %298 = vmatpush1.bf16.msra.mxu0 %v277
    %299 = vmatprep.subr.bf16.mxu0 0
    %300 = vmatpush1.bf16.msra.mxu0 %v278
    %301 = vmatprep.subr.bf16.mxu0 0
    %302 = vmatpush1.bf16.msra.mxu0 %v279
    %303 = vmatprep.subr.bf16.mxu0 0
    %304 = vmatpush1.bf16.msra.mxu0 %v280
    %305 = vmatprep.subr.bf16.mxu0 0
    %306 = vmatpush1.bf16.msra.mxu0 0
    %307 = vmatprep.subr.bf16.mxu0 0
    %308 = vmatpush1.bf16.msra.mxu0 0
    %309 = vmatprep.subr.bf16.mxu0 0
    %310 = vmatpush1.bf16.msra.mxu0 0
    %311 = vmatprep.subr.bf16.mxu0 0
    %312 = vmatpush1.bf16.msra.mxu0 0
    %313 = vmatprep.subr.bf16.mxu0 0
    %314 = vmatpush1.bf16.msra.mxu0 0
    %315 = vmatprep.subr.bf16.mxu0 0
    %316 = vmatpush1.bf16.msra.mxu0 0
    %317 = vmatprep.subr.bf16.mxu0 0
    %318 = vmatpush1.bf16.msra.mxu0 0
    %319 = vmatprep.subr.bf16.mxu0 0
    %320 = vmatpush1.bf16.msra.mxu0 0
    %321 = vmatprep.mubr.bf16.mxu0 0
    %322 = vmatmul.mubr.bf16.gmra.mrb[0].mxu0 %v220
    %v323 = vpop.f32.mrb[0].mxu0
    %v324 = vadd.f32 %v240, %v323
    %v325 = vpop.f32.mrb[0].mxu0
    %v326 = vpop.f32.mrb[0].mxu0
    %v327 = vadd.f32 %v240, %v326
    %v328 = vpop.f32.mrb[0].mxu0
    %329 = vdwg.mxu0
    %330 = vadd.xlane.f32.xlu0 %v324
    %v331 = vpop.xlane.xlu0 %330
    %332 = vadd.xlane.f32.xlu0 %v327
    %v333 = vpop.xlane.xlu0 %332
    %v334 = vmul.f32 %v331, 0.015625
    %v335 = vmul.f32 %v333, 0.015625
    %v336 = vmul.f32 %v324, %v324
    %v337 = vmul.f32 %v327, %v327
    %338 = vadd.xlane.f32.xlu0 %v336
    %v339 = vpop.xlane.xlu0 %338
    %340 = vadd.xlane.f32.xlu0 %v337
    %v341 = vpop.xlane.xlu0 %340
    %v342 = vmul.f32 %v339, 0.015625
    %v343 = vmul.f32 %v341, 0.015625
    %v344 = vmul.f32 %v334, %v334
    %v345 = vmul.f32 %v335, %v335
    %v346 = vsub.f32 %v342, %v344
    %v347 = vsub.f32 %v343, %v345
    %v348 = vmax.f32 %v346, 0.0
    %v349 = vmax.f32 %v347, 0.0
    %v350 = vsub.f32 %v324, %v334
    %v351 = vsub.f32 %v327, %v335
    %v352 = vadd.f32 %v348, 1e-05
    %v353 = vadd.f32 %v349, 1e-05
    %v354 = vrsqrt.pop %v352
    %v355 = vrsqrt.pop %v353
    %v356 = vmul.f32 %v350, %v354
    %v357 = vmul.f32 %v351, %v355
    %v358 = vlaneseq
    %v359 = vshrl.u32 %v358, 7
    %v360 = vsub.s32 4, %v359
    %v361 = vrot.slane %v60, %v360
    %v362 = vmul.f32 %v356, %v361
    %v363 = vmul.f32 %v357, %v361
    %v364 = vlaneseq
    %v365 = vshrl.u32 %v364, 7
    %v366 = vsub.s32 5, %v365
    %v367 = vrot.slane %v60, %v366
    %v368 = vadd.f32 %v362, %v367
    %v369 = vadd.f32 %v363, %v367
    %v370 = vadd.f32 %v368, %v172
    %v371 = vadd.f32 %v369, %v175
    %v372 = vmax.f32 %v370, 0.0
    %v373 = vmax.f32 %v371, 0.0
    %374 = vst [vmem:[#allocation8] sm:$0xff] %v372
    %375 = vst [vmem:[#allocation8 + $0x8] sm:$0xff] %v373
    // Predicated region
    $region30: #{tpu_custom_call.1} parent=1 // pred_check
      _
    $region31: #{tpu_custom_call.1} parent=1 // pred_check_branch
      %377 = sbr.rel (0) target = $region33
    $region32: #{tpu_custom_call.1} parent=1 // pred_region
      %s379 = ssub.s32 256, 256
      %380 = vsyncadd [#allocation4], %s379
      %s381 = sshll.u32 [#allocation8], 4
      %s382 = int_to_ptr.vmem [resolvable:$true] %s381
      %387 = dma.vmem_to_hbm [thread:$0]  %s382, 256, %s4, [#allocation4], 128, 128, 8
    $region33: #{tpu_custom_call.1} parent=1 // pred_fallthru
      _
    // Predicated region
    $region34: #{tpu_custom_call.1} parent=1 // pred_check
      _
    $region35: #{tpu_custom_call.1} parent=1 // pred_check_branch
      %389 = sbr.rel (0) target = $region37
    $region36: #{tpu_custom_call.1} parent=1 // pred_region
      %390 = dma.done [#allocation4], 256
    $region37: #{tpu_custom_call.1} parent=1 // pred_fallthru
      _
    %391 = vsyncpa [#allocation3], 1
    %392 = vsyncpa [#allocation6], 1
    %393 = vsyncpa [#allocation4], 1

// kernel: tpu_custom_call.1
$region0: #{tpu_custom_call.1}
  #allocation0 [shape = 'u32[]', space=smem, size = 0x4, offset = 0x4, fixed_abs, tag = 'smem constant byte address 0x4 - core index']
  #allocation1 [shape = 'u32[144,128]{1,0:T(1,128)}', space=vmem, size = 0x12000, scoped, tag = 'internal scratch']
  %s0 = inlined_call_operand.hbm [shape: bf16[16,128], index: 0, kind: input, shape index: {}]
  %s1 = inlined_call_operand.hbm [shape: bf16[128,128], index: 1, kind: input, shape index: {}]
  %s2 = inlined_call_operand.hbm [shape: bf16[128,128], index: 2, kind: input, shape index: {}]
  %s3 = inlined_call_operand.vmem [shape: f32[8,128], index: 3, kind: input, shape index: {}]
  %s4 = inlined_call_operand.hbm [shape: f32[16,128], index: 4, kind: output, shape index: {}]
  %s5 = sld [smem:[#allocation0]]
  $region38: #{tpu_custom_call.1} parent=0
    _
  %s7 = ssub.s32 1, %s5
  %s8 = scalar_select 0, %s7, %s5
  $region1: #{tpu_custom_call.1} parent=0
    #allocation2 [shape = 'u8[4096]{0}', space=vmem, size = 0x1000, scoped, tag = 'input window, operand 0, single buffered']
    #allocation3 [shape = 's32[1]{0}', space=sflag, size = 0x4, scoped, tag = 'scoped memory for tpu_custom_call.1']
    #allocation4 [shape = 's32[1]{0}', space=sflag, size = 0x4, scoped, tag = 'scoped memory for tpu_custom_call.1']
    #allocation5 [shape = 'u8[32768]{0}', space=vmem, size = 0x8000, scoped, tag = 'input window, operand 1, single buffered']
    #allocation6 [shape = 's32[1]{0}', space=sflag, size = 0x4, scoped, tag = 'scoped memory for tpu_custom_call.1']
    #allocation7 [shape = 'u8[32768]{0}', space=vmem, size = 0x8000, scoped, tag = 'input window, operand 2, single buffered']
    #allocation8 [shape = 'u8[8192]{0}', space=vmem, size = 0x2000, scoped, tag = 'output window, operand 0, single buffered']
    %9 = vsyncpa [#allocation3], 0
    %10 = vsyncpa [#allocation6], 0
    %11 = vsyncpa [#allocation4], 0
    // Predicated region
    $region2: #{tpu_custom_call.1} parent=1 // pred_check
      _
    $region3: #{tpu_custom_call.1} parent=1 // pred_check_branch
      %13 = sbr.rel (0) target = $region5
    $region4: #{tpu_custom_call.1} parent=1 // pred_region
      %s15 = ssub.s32 128, 128
      %16 = vsyncadd [#allocation3], %s15
      %s17 = sshll.u32 [#allocation2], 4
      %s18 = int_to_ptr.vmem [resolvable:$true] %s17
      %23 = dma.hbm_to_vmem [thread:$0]  %s0, 128, %s18, [#allocation3], 64, 64, 4
    $region5: #{tpu_custom_call.1} parent=1 // pred_fallthru
      _
    // Predicated region
    $region6: #{tpu_custom_call.1} parent=1 // pred_check
      _
    $region7: #{tpu_custom_call.1} parent=1 // pred_check_branch
      %25 = sbr.rel (0) target = $region9
    $region8: #{tpu_custom_call.1} parent=1 // pred_region
      %s27 = ssub.s32 1024, 1024
      %28 = vsyncadd [#allocation6], %s27
      %s29 = sshll.u32 [#allocation5], 4
      %s30 = int_to_ptr.vmem [resolvable:$true] %s29
      %35 = dma.hbm_to_vmem [thread:$0]  %s1, 1024, %s30, [#allocation6], 64, 64, 4
    $region9: #{tpu_custom_call.1} parent=1 // pred_fallthru
      _
    // Predicated region
    $region10: #{tpu_custom_call.1} parent=1 // pred_check
      _
    $region11: #{tpu_custom_call.1} parent=1 // pred_check_branch
      %37 = sbr.rel (0) target = $region13
    $region12: #{tpu_custom_call.1} parent=1 // pred_region
      %s39 = ssub.s32 1024, 1024
      %40 = vsyncadd [#allocation6], %s39
      %s41 = sshll.u32 [#allocation7], 4
      %s42 = int_to_ptr.vmem [resolvable:$true] %s41
      %47 = dma.hbm_to_vmem [thread:$0]  %s2, 1024, %s42, [#allocation6], 64, 64, 4
    $region13: #{tpu_custom_call.1} parent=1 // pred_fallthru
      _
    // Predicated region
    $region14: #{tpu_custom_call.1} parent=1 // pred_check
      _
    $region15: #{tpu_custom_call.1} parent=1 // pred_check_branch
      %49 = sbr.rel (0) target = $region17
    $region16: #{tpu_custom_call.1} parent=1 // pred_region
      _
    $region17: #{tpu_custom_call.1} parent=1 // pred_fallthru
      _
    // Predicated region
    $region18: #{tpu_custom_call.1} parent=1 // pred_check
      _
    $region19: #{tpu_custom_call.1} parent=1 // pred_check_branch
      %51 = sbr.rel (0) target = $region21
    $region20: #{tpu_custom_call.1} parent=1 // pred_region
      %52 = dma.done [#allocation3], 128
    $region21: #{tpu_custom_call.1} parent=1 // pred_fallthru
      _
    // Predicated region
    $region22: #{tpu_custom_call.1} parent=1 // pred_check
      _
    $region23: #{tpu_custom_call.1} parent=1 // pred_check_branch
      %54 = sbr.rel (0) target = $region25
    $region24: #{tpu_custom_call.1} parent=1 // pred_region
      %55 = dma.done [#allocation6], 1024
    $region25: #{tpu_custom_call.1} parent=1 // pred_fallthru
      _
    // Predicated region
    $region26: #{tpu_custom_call.1} parent=1 // pred_check
      _
    $region27: #{tpu_custom_call.1} parent=1 // pred_check_branch
      %57 = sbr.rel (0) target = $region29
    $region28: #{tpu_custom_call.1} parent=1 // pred_region
      %58 = dma.done [#allocation6], 1024
    $region29: #{tpu_custom_call.1} parent=1 // pred_fallthru
      _
    %v60 = vld [vmem:[%s3] sm:$0xff]
    %v61 = vld [vmem:[#allocation2] sm:$0xf]
    %v62 = vld [vmem:[#allocation2 + $0x4] sm:$0xf]
    %v63 = vld [vmem:[#allocation5] sm:$0xf]
    %v64 = vld [vmem:[#allocation5 + $0x4] sm:$0xf]
    %v65 = vld [vmem:[#allocation5 + $0x8] sm:$0xf]
    %v66 = vld [vmem:[#allocation5 + $0xc] sm:$0xf]
    %v67 = vld [vmem:[#allocation5 + $0x10] sm:$0xf]
    %v68 = vld [vmem:[#allocation5 + $0x14] sm:$0xf]
    %v69 = vld [vmem:[#allocation5 + $0x18] sm:$0xf]
    %v70 = vld [vmem:[#allocation5 + $0x1c] sm:$0xf]
    %v71 = vld [vmem:[#allocation5 + $0x20] sm:$0xf]
    %v72 = vld [vmem:[#allocation5 + $0x24] sm:$0xf]
    %v73 = vld [vmem:[#allocation5 + $0x28] sm:$0xf]
    %v74 = vld [vmem:[#allocation5 + $0x2c] sm:$0xf]
    %v75 = vld [vmem:[#allocation5 + $0x30] sm:$0xf]
    %v76 = vld [vmem:[#allocation5 + $0x34] sm:$0xf]
    %v77 = vld [vmem:[#allocation5 + $0x38] sm:$0xf]
    %v78 = vld [vmem:[#allocation5 + $0x3c] sm:$0xf]
    %v79 = vlaneseq
    %v80 = vshrl.u32 %v79, 7
    %v81 = vsub.s32 0, %v80
    %v82 = vrot.slane %v60, %v81
    %v85 = vunpack.c.l.b16 %v61
    %v86 = vunpack.c.l.b16 %v62
    %v87 = vpack.c.b16 %v86, %v85
    %v105 = vunpack.c.l.b16 %v63
    %v106 = vunpack.c.l.b16 %v64
    %v107 = vunpack.c.l.b16 %v65
    %v108 = vunpack.c.l.b16 %v66
    %v109 = vunpack.c.l.b16 %v67
    %v110 = vunpack.c.l.b16 %v68
    %v111 = vunpack.c.l.b16 %v69
    %v112 = vunpack.c.l.b16 %v70
    %v113 = vunpack.c.l.b16 %v71
    %v114 = vunpack.c.l.b16 %v72
    %v115 = vunpack.c.l.b16 %v73
    %v116 = vunpack.c.l.b16 %v74
    %v117 = vunpack.c.l.b16 %v75
    %v118 = vunpack.c.l.b16 %v76
    %v119 = vunpack.c.l.b16 %v77
    %v120 = vunpack.c.l.b16 %v78
    %v121 = vpack.c.b16 %v106, %v105
    %v122 = vpack.c.b16 %v108, %v107
    %v123 = vpack.c.b16 %v110, %v109
    %v124 = vpack.c.b16 %v112, %v111
    %v125 = vpack.c.b16 %v114, %v113
    %v126 = vpack.c.b16 %v116, %v115
    %v127 = vpack.c.b16 %v118, %v117
    %v128 = vpack.c.b16 %v120, %v119
    %137 = vmatprep.subr.bf16.mxu0 0
    %138 = vmatpush1.bf16.msra.mxu0 %v121
    %139 = vmatprep.subr.bf16.mxu0 0
    %140 = vmatpush1.bf16.msra.mxu0 %v122
    %141 = vmatprep.subr.bf16.mxu0 0
    %142 = vmatpush1.bf16.msra.mxu0 %v123
    %143 = vmatprep.subr.bf16.mxu0 0
    %144 = vmatpush1.bf16.msra.mxu0 %v124
    %145 = vmatprep.subr.bf16.mxu0 0
    %146 = vmatpush1.bf16.msra.mxu0 %v125
    %147 = vmatprep.subr.bf16.mxu0 0
    %148 = vmatpush1.bf16.msra.mxu0 %v126
    %149 = vmatprep.subr.bf16.mxu0 0
    %150 = vmatpush1.bf16.msra.mxu0 %v127
    %151 = vmatprep.subr.bf16.mxu0 0
    %152 = vmatpush1.bf16.msra.mxu0 %v128
    %153 = vmatprep.subr.bf16.mxu0 0
    %154 = vmatpush1.bf16.msra.mxu0 0
    %155 = vmatprep.subr.bf16.mxu0 0
    %156 = vmatpush1.bf16.msra.mxu0 0
    %157 = vmatprep.subr.bf16.mxu0 0
    %158 = vmatpush1.bf16.msra.mxu0 0
    %159 = vmatprep.subr.bf16.mxu0 0
    %160 = vmatpush1.bf16.msra.mxu0 0
    %161 = vmatprep.subr.bf16.mxu0 0
    %162 = vmatpush1.bf16.msra.mxu0 0
    %163 = vmatprep.subr.bf16.mxu0 0
    %164 = vmatpush1.bf16.msra.mxu0 0
    %165 = vmatprep.subr.bf16.mxu0 0
    %166 = vmatpush1.bf16.msra.mxu0 0
    %167 = vmatprep.subr.bf16.mxu0 0
    %168 = vmatpush1.bf16.msra.mxu0 0
    %169 = vmatprep.mubr.bf16.mxu0 0
    %170 = vmatmul.mubr.bf16.gmra.mrb[0].mxu0 %v87
    %v171 = vpop.f32.mrb[0].mxu0
    %v172 = vadd.f32 %v82, %v171
    %v173 = vpop.f32.mrb[0].mxu0
    %v174 = vpop.f32.mrb[0].mxu0
    %v175 = vadd.f32 %v82, %v174
    %v176 = vpop.f32.mrb[0].mxu0
    %177 = vdwg.mxu0
    %178 = vadd.xlane.f32.xlu0 %v172
    %v179 = vpop.xlane.xlu0 %178
    %180 = vadd.xlane.f32.xlu0 %v175
    %v181 = vpop.xlane.xlu0 %180
    %v182 = vmul.f32 %v179, 0.015625
    %v183 = vmul.f32 %v181, 0.015625
    %v184 = vmul.f32 %v172, %v172
    %v185 = vmul.f32 %v175, %v175
    %186 = vadd.xlane.f32.xlu0 %v184
    %v187 = vpop.xlane.xlu0 %186
    %188 = vadd.xlane.f32.xlu0 %v185
    %v189 = vpop.xlane.xlu0 %188
    %v190 = vmul.f32 %v187, 0.015625
    %v191 = vmul.f32 %v189, 0.015625
    %v192 = vmul.f32 %v182, %v182
    %v193 = vmul.f32 %v183, %v183
    %v194 = vsub.f32 %v190, %v192
    %v195 = vsub.f32 %v191, %v193
    %v196 = vmax.f32 %v194, 0.0
    %v197 = vmax.f32 %v195, 0.0
    %v198 = vsub.f32 %v172, %v182
    %v199 = vsub.f32 %v175, %v183
    %v200 = vadd.f32 %v196, 1e-05
    %v201 = vadd.f32 %v197, 1e-05
    %v202 = vrsqrt.pop %v200
    %v203 = vrsqrt.pop %v201
    %v204 = vmul.f32 %v198, %v202
    %v205 = vmul.f32 %v199, %v203
    %v206 = vlaneseq
    %v207 = vshrl.u32 %v206, 7
    %v208 = vsub.s32 2, %v207
    %v209 = vrot.slane %v60, %v208
    %v210 = vmul.f32 %v204, %v209
    %v211 = vmul.f32 %v205, %v209
    %v212 = vlaneseq
    %v213 = vshrl.u32 %v212, 7
    %v214 = vsub.s32 3, %v213
    %v215 = vrot.slane %v60, %v214
    %v216 = vadd.f32 %v210, %v215
    %v217 = vadd.f32 %v211, %v215
    %v218 = vmax.f32 %v216, 0.0
    %v219 = vmax.f32 %v217, 0.0
    %v220 = vpack.c.bf16 %v219, %v218
    %v221 = vld [vmem:[#allocation7] sm:$0xf]
    %v222 = vld [vmem:[#allocation7 + $0x4] sm:$0xf]
    %v223 = vld [vmem:[#allocation7 + $0x8] sm:$0xf]
    %v224 = vld [vmem:[#allocation7 + $0xc] sm:$0xf]
    %v225 = vld [vmem:[#allocation7 + $0x10] sm:$0xf]
    %v226 = vld [vmem:[#allocation7 + $0x14] sm:$0xf]
    %v227 = vld [vmem:[#allocation7 + $0x18] sm:$0xf]
    %v228 = vld [vmem:[#allocation7 + $0x1c] sm:$0xf]
    %v229 = vld [vmem:[#allocation7 + $0x20] sm:$0xf]
    %v230 = vld [vmem:[#allocation7 + $0x24] sm:$0xf]
    %v231 = vld [vmem:[#allocation7 + $0x28] sm:$0xf]
    %v232 = vld [vmem:[#allocation7 + $0x2c] sm:$0xf]
    %v233 = vld [vmem:[#allocation7 + $0x30] sm:$0xf]
    %v234 = vld [vmem:[#allocation7 + $0x34] sm:$0xf]
    %v235 = vld [vmem:[#allocation7 + $0x38] sm:$0xf]
    %v236 = vld [vmem:[#allocation7 + $0x3c] sm:$0xf]
    %v237 = vlaneseq
    %v238 = vshrl.u32 %v237, 7
    %v239 = vsub.s32 1, %v238
    %v240 = vrot.slane %v60, %v239
    %v257 = vunpack.c.l.b16 %v221
    %v258 = vunpack.c.l.b16 %v222
    %v259 = vunpack.c.l.b16 %v223
    %v260 = vunpack.c.l.b16 %v224
    %v261 = vunpack.c.l.b16 %v225
    %v262 = vunpack.c.l.b16 %v226
    %v263 = vunpack.c.l.b16 %v227
    %v264 = vunpack.c.l.b16 %v228
    %v265 = vunpack.c.l.b16 %v229
    %v266 = vunpack.c.l.b16 %v230
    %v267 = vunpack.c.l.b16 %v231
    %v268 = vunpack.c.l.b16 %v232
    %v269 = vunpack.c.l.b16 %v233
    %v270 = vunpack.c.l.b16 %v234
    %v271 = vunpack.c.l.b16 %v235
    %v272 = vunpack.c.l.b16 %v236
    %v273 = vpack.c.b16 %v258, %v257
    %v274 = vpack.c.b16 %v260, %v259
    %v275 = vpack.c.b16 %v262, %v261
    %v276 = vpack.c.b16 %v264, %v263
    %v277 = vpack.c.b16 %v266, %v265
    %v278 = vpack.c.b16 %v268, %v267
    %v279 = vpack.c.b16 %v270, %v269
    %v280 = vpack.c.b16 %v272, %v271
    %289 = vmatprep.subr.bf16.mxu0 0
    %290 = vmatpush1.bf16.msra.mxu0 %v273
    %291 = vmatprep.subr.bf16.mxu0 0
    %292 = vmatpush1.bf16.msra.mxu0 %v274
    %293 = vmatprep.subr.bf16.mxu0 0
    %294 = vmatpush1.bf16.msra.mxu0 %v275
    %295 = vmatprep.subr.bf16.mxu0 0
    %296 = vmatpush1.bf16.msra.mxu0 %v276
    %297 = vmatprep.subr.bf16.mxu0 0
    %298 = vmatpush1.bf16.msra.mxu0 %v277
    %299 = vmatprep.subr.bf16.mxu0 0
    %300 = vmatpush1.bf16.msra.mxu0 %v278
    %301 = vmatprep.subr.bf16.mxu0 0
    %302 = vmatpush1.bf16.msra.mxu0 %v279
    %303 = vmatprep.subr.bf16.mxu0 0
    %304 = vmatpush1.bf16.msra.mxu0 %v280
    %305 = vmatprep.subr.bf16.mxu0 0
    %306 = vmatpush1.bf16.msra.mxu0 0
    %307 = vmatprep.subr.bf16.mxu0 0
    %308 = vmatpush1.bf16.msra.mxu0 0
    %309 = vmatprep.subr.bf16.mxu0 0
    %310 = vmatpush1.bf16.msra.mxu0 0
    %311 = vmatprep.subr.bf16.mxu0 0
    %312 = vmatpush1.bf16.msra.mxu0 0
    %313 = vmatprep.subr.bf16.mxu0 0
    %314 = vmatpush1.bf16.msra.mxu0 0
    %315 = vmatprep.subr.bf16.mxu0 0
    %316 = vmatpush1.bf16.msra.mxu0 0
    %317 = vmatprep.subr.bf16.mxu0 0
    %318 = vmatpush1.bf16.msra.mxu0 0
    %319 = vmatprep.subr.bf16.mxu0 0
    %320 = vmatpush1.bf16.msra.mxu0 0
    %321 = vmatprep.mubr.bf16.mxu0 0
    %322 = vmatmul.mubr.bf16.gmra.mrb[0].mxu0 %v220
    %v323 = vpop.f32.mrb[0].mxu0
    %v324 = vadd.f32 %v240, %v323
    %v325 = vpop.f32.mrb[0].mxu0
    %v326 = vpop.f32.mrb[0].mxu0
    %v327 = vadd.f32 %v240, %v326
    %v328 = vpop.f32.mrb[0].mxu0
    %329 = vdwg.mxu0
    %330 = vadd.xlane.f32.xlu0 %v324
    %v331 = vpop.xlane.xlu0 %330
    %332 = vadd.xlane.f32.xlu0 %v327
    %v333 = vpop.xlane.xlu0 %332
    %v334 = vmul.f32 %v331, 0.015625
    %v335 = vmul.f32 %v333, 0.015625
    %v336 = vmul.f32 %v324, %v324
    %v337 = vmul.f32 %v327, %v327
    %338 = vadd.xlane.f32.xlu0 %v336
    %v339 = vpop.xlane.xlu0 %338
    %340 = vadd.xlane.f32.xlu0 %v337
    %v341 = vpop.xlane.xlu0 %340
    %v342 = vmul.f32 %v339, 0.015625
    %v343 = vmul.f32 %v341, 0.015625
    %v344 = vmul.f32 %v334, %v334
    %v345 = vmul.f32 %v335, %v335
    %v346 = vsub.f32 %v342, %v344
    %v347 = vsub.f32 %v343, %v345
    %v348 = vmax.f32 %v346, 0.0
    %v349 = vmax.f32 %v347, 0.0
    %v350 = vsub.f32 %v324, %v334
    %v351 = vsub.f32 %v327, %v335
    %v352 = vadd.f32 %v348, 1e-05
    %v353 = vadd.f32 %v349, 1e-05
    %v354 = vrsqrt.pop %v352
    %v355 = vrsqrt.pop %v353
    %v356 = vmul.f32 %v350, %v354
    %v357 = vmul.f32 %v351, %v355
    %v358 = vlaneseq
    %v359 = vshrl.u32 %v358, 7
    %v360 = vsub.s32 4, %v359
    %v361 = vrot.slane %v60, %v360
    %v362 = vmul.f32 %v356, %v361
    %v363 = vmul.f32 %v357, %v361
    %v364 = vlaneseq
    %v365 = vshrl.u32 %v364, 7
    %v366 = vsub.s32 5, %v365
    %v367 = vrot.slane %v60, %v366
    %v368 = vadd.f32 %v362, %v367
    %v369 = vadd.f32 %v363, %v367
    %v370 = vadd.f32 %v368, %v172
    %v371 = vadd.f32 %v369, %v175
    %v372 = vmax.f32 %v370, 0.0
    %v373 = vmax.f32 %v371, 0.0
    %374 = vst [vmem:[#allocation8] sm:$0xff] %v372
    %375 = vst [vmem:[#allocation8 + $0x8] sm:$0xff] %v373
    // Predicated region
    $region30: #{tpu_custom_call.1} parent=1 // pred_check
      _
    $region31: #{tpu_custom_call.1} parent=1 // pred_check_branch
      %377 = sbr.rel (0) target = $region33
    $region32: #{tpu_custom_call.1} parent=1 // pred_region
      %s379 = ssub.s32 256, 256
      %380 = vsyncadd [#allocation4], %s379
      %s381 = sshll.u32 [#allocation8], 4
      %s382 = int_to_ptr.vmem [resolvable:$true] %s381
      %387 = dma.vmem_to_hbm [thread:$0]  %s382, 256, %s4, [#allocation4], 128, 128, 8
    $region33: #{tpu_custom_call.1} parent=1 // pred_fallthru
      _
    // Predicated region
    $region34: #{tpu_custom_call.1} parent=1 // pred_check
      _
    $region35: #{tpu_custom_call.1} parent=1 // pred_check_branch
      %389 = sbr.rel (0) target = $region37
    $region36: #{tpu_custom_call.1} parent=1 // pred_region
      %390 = dma.done [#allocation4], 256
    $region37: #{tpu_custom_call.1} parent=1 // pred_fallthru
      _
    %391 = vsyncpa [#allocation3], 1
    %392 = vsyncpa [#allocation6], 1
    %393 = vsyncpa [#allocation4], 1

</llo_original>
